<compile_context>
chip_gen: v7x
topology: tpu7x:2x2x1
jax: 0.10.0
libtpu: 0.0.40
codegen_flags: <defaults>
</compile_context>

<pallas_src>
from functools import partial

import jax
import jax.numpy as jnp
from jax import lax
from jax.experimental import pallas as pl
from jax.experimental.pallas import tpu as pltpu


# ----------------------------- in-kernel math ------------------------------

def _erf(x):
    # Abramowitz & Stegun 7.1.26 rational approximation of erf (max abs
    # error ~1.5e-7).  Uses only VPU/EUP ops guaranteed to lower in Mosaic.
    a1, a2, a3, a4, a5 = 0.254829592, -0.284496736, 1.421413741, -1.453152027, 1.061405429
    p = 0.3275911
    sgn = jnp.where(x >= 0.0, 1.0, -1.0)
    ax = jnp.abs(x)
    t = 1.0 / (1.0 + p * ax)   # exact divide kept: approx reciprocal would eat the 1e-4 margin
    poly = ((((a5 * t + a4) * t + a3) * t + a2) * t + a1) * t
    y = 1.0 - poly * jnp.exp(-ax * ax)
    return sgn * y


def _gelu_exact(x):
    # matches torch.nn.GELU() (erf-based, approximate='none')
    return 0.5 * x * (1.0 + _erf(x * 0.7071067811865476))


# ------------------------------ fused kernel --------------------------------

def plkb_fused_kernel(x_ref, w1_ref, b1_ref, w2_ref, b2_ref,
                      cw1_ref, cw2_ref, cb_ref, o_ref, ypad_ref,
                      *, H, W, C, Cs, K, Bb):
    """Fused PLKB forward for Bb batch images.

    x_ref  : (Bb, C, H*W)      flattened NCHW activation (lane-dense)
    w1/w2  : (Bb*Cs, K)        depthwise 1xK / Kx1 weights (host-tiled per image)
    b1/b2  : (Bb*Cs, 1)        depthwise biases (host-tiled)
    cw1    : (C, Cs)           1x1 weight columns hitting the depthwise branch
    cw2    : (C, C-Cs)         1x1 weight columns hitting the pass-through branch
    cb     : (C, 1)            1x1 bias
    o_ref  : (Bb, C, H*W)
    ypad   : (Bb*Cs, (H+2*pad)*W) f32 VMEM scratch, zero halos
    """
    HW = H * W
    pad = K // 2
    padW = pad * W
    Rows = Bb * Cs

    # ---- zero the halo rows of the padded scratch (tiny, per-step) ----
    ypad_ref[:, :padW] = jnp.zeros((Rows, padW), jnp.float32)
    ypad_ref[:, padW + HW:] = jnp.zeros((Rows, padW), jnp.float32)

    # ---- gather the depthwise-branch channels of all Bb images into one
    #      sublane-dense (Bb*Cs, HW) slab (packed through the scratch centre;
    #      the pass-through half x2 is deliberately NOT loaded yet) ----
    if Bb == 1:
        x1 = x_ref[0, :Cs, :].astype(jnp.float32)
    else:
        for b in range(Bb):
            ypad_ref[b * Cs:(b + 1) * Cs, padW:padW + HW] = (
                x_ref[b, :Cs, :].astype(jnp.float32))
        x1 = ypad_ref[:, padW:padW + HW]

    w1 = w1_ref[...]                               # (Rows, K)

    # column index of every flattened position -- in-kernel mask generation
    wcol = lax.broadcasted_iota(jnp.int32, (1, HW), 1) % W

    # ---- DWConv_1xK : shift along W (lane axis), in-kernel validity masks ----
    acc = w1[:, pad:pad + 1] * x1                  # centre tap, no mask needed
    for k in range(K):
        d = k - pad
        if d == 0:
            continue
        shifted = pltpu.roll(x1, shift=(-d) % HW, axis=1)   # res[i] = x1[(i+d) mod HW]
        if d > 0:
            maskf = (wcol < (W - d)).astype(jnp.float32)
        else:
            maskf = (wcol >= (-d)).astype(jnp.float32)
        acc = acc + w1[:, k:k + 1] * (shifted * maskf)
    y = acc + b1_ref[...]                          # (Rows, HW)

    # ---- DWConv_Kx1 : offset loads from the zero-padded scratch
    #      (tap k of output position i lives at padded index i + k*W;
    #      no XLU rolls, no masks) ----
    ypad_ref[:, padW:padW + HW] = y
    w2 = w2_ref[...]
    acc2 = w2[:, pad:pad + 1] * y                  # centre tap straight from vregs
    for k in range(K):
        d = k - pad
        if d == 0:
            continue
        tap = ypad_ref[:, k * W:k * W + HW]
        acc2 = acc2 + w2[:, k:k + 1] * tap
    z = acc2 + b2_ref[...]                         # (Rows, HW)

    # ---- 1x1 conv: split-weight matmuls absorb the torch.cat, then GELU ----
    cw1 = cw1_ref[...]
    cw2 = cw2_ref[...]
    cb = cb_ref[...]
    for b in range(Bb):
        z_b = z[b * Cs:(b + 1) * Cs, :]
        x2_b = x_ref[b, Cs:, :].astype(jnp.float32)     # deferred load of pass-through half
        out_b = (jnp.dot(cw1, z_b, preferred_element_type=jnp.float32)
                 + jnp.dot(cw2, x2_b, preferred_element_type=jnp.float32)
                 + cb)
        o_ref[b] = _gelu_exact(out_b).astype(o_ref.dtype)


# ------------------------------ host wrapper --------------------------------

def plkb_forward(x, params, large_kernel, split_channels):
    B, C, H, W = x.shape
    Cs = split_channels
    K = large_kernel
    HW = H * W
    pad = K // 2
    Hp = H + 2 * pad
    assert 0 < Cs < C, "fused weight split requires 0 < split_channels < channels"

    # Fold several images into one grid step so the (Bb*Cs, HW) depthwise slab
    # fills all 8 f32 sublanes of each vreg when Cs < 8, and per-step overhead
    # / weight re-touch is amortised.
    Bb = 1
    if Cs < 8:
        for cand in (8, 4, 2):
            if B % cand == 0 and cand * Cs <= 16:
                Bb = cand
                break
    Rows = Bb * Cs

    # Free metadata reshape (contiguous trailing-dim collapse) -> lane-dense layout.
    xf = x.reshape(B, C, HW)

    # Depthwise weights/biases tiled per folded image (tiny host arrays).
    w1_t = jnp.tile(params["w_1xK"], (Bb, 1))
    b1_t = jnp.tile(params["b_1xK"], (Bb, 1))
    w2_t = jnp.tile(params["w_Kx1"], (Bb, 1))
    b2_t = jnp.tile(params["b_Kx1"], (Bb, 1))

    # Split the 1x1 weight so the concat never materialises.
    cw = params["conv1_w"]                                 # (C, C)
    cw1 = cw[:, :Cs]                                       # hits depthwise branch
    cw2 = cw[:, Cs:]                                       # hits pass-through branch

    kern = partial(plkb_fused_kernel, H=H, W=W, C=C, Cs=Cs, K=K, Bb=Bb)

    # VMEM budget: double-buffered in+out blocks + padded scratch + headroom
    # (capped at 64 MiB so the same kernel stays legal on v7x).
    block_bytes = Bb * C * HW * x.dtype.itemsize
    scratch_bytes = Rows * Hp * W * 4
    vmem_limit = int(min(max(4 * block_bytes + scratch_bytes + (4 << 20), 8 << 20),
                         64 << 20))

    out_flat = pl.pallas_call(
        kern,
        out_shape=jax.ShapeDtypeStruct((B, C, HW), x.dtype),
        grid=(B // Bb,),
        in_specs=[
            pl.BlockSpec((Bb, C, HW), lambda g: (g, 0, 0)),   # activation
            pl.BlockSpec((Rows, K), lambda g: (0, 0)),        # w_1xK (tiled)
            pl.BlockSpec((Rows, 1), lambda g: (0, 0)),        # b_1xK
            pl.BlockSpec((Rows, K), lambda g: (0, 0)),        # w_Kx1
            pl.BlockSpec((Rows, 1), lambda g: (0, 0)),        # b_Kx1
            pl.BlockSpec((C, Cs), lambda g: (0, 0)),          # conv1 weight (dw half)
            pl.BlockSpec((C, C - Cs), lambda g: (0, 0)),      # conv1 weight (pass half)
            pl.BlockSpec((C, 1), lambda g: (0, 0)),           # conv1 bias
        ],
        out_specs=pl.BlockSpec((Bb, C, HW), lambda g: (g, 0, 0)),
        scratch_shapes=[pltpu.VMEM((Rows, Hp * W), jnp.float32)],
        compiler_params=pltpu.CompilerParams(
            dimension_semantics=("parallel",),
            vmem_limit_bytes=vmem_limit,
        ),
    )(xf, w1_t, b1_t, w2_t, b2_t, cw1, cw2, params["conv1_b"])

    return out_flat.reshape(B, C, H, W)


# --------------------------- pure-JAX reference ------------------------------

def plkb_reference(x, params, large_kernel, split_channels):
    B, C, H, W = x.shape
    Cs, K = split_channels, large_kernel
    pad = K // 2
    x1, x2 = x[:, :Cs], x[:, Cs:]

    w1 = params["w_1xK"].reshape(Cs, 1, 1, K)                # depthwise (1,K)
    w2 = params["w_Kx1"].reshape(Cs, 1, K, 1)                # depthwise (K,1)
    dn = ("NCHW", "OIHW", "NCHW")

    y = lax.conv_general_dilated(x1, w1, (1, 1), [(0, 0), (pad, pad)],
                                 dimension_numbers=dn, feature_group_count=Cs)
    y = y + params["b_1xK"].reshape(1, Cs, 1, 1)
    z = lax.conv_general_dilated(y, w2, (1, 1), [(pad, pad), (0, 0)],
                                 dimension_numbers=dn, feature_group_count=Cs)
    z = z + params["b_Kx1"].reshape(1, Cs, 1, 1)

    cat = jnp.concatenate([z, x2], axis=1)
    cw = params["conv1_w"].reshape(C, C, 1, 1)
    o = lax.conv_general_dilated(cat, cw, (1, 1), [(0, 0), (0, 0)],
                                 dimension_numbers=dn)
    o = o + params["conv1_b"].reshape(1, C, 1, 1)
    return jax.nn.gelu(o, approximate=False)


# ----------------------------------- main ------------------------------------

if __name__ == "__main__":
    B, C, H, W = 2, 8, 16, 16
    large_kernel = 7
    split_factor = 0.5
    Cs = int(C * split_factor)

    key = jax.random.PRNGKey(0)
    ks = jax.random.split(key, 7)
    x = jax.random.normal(ks[0], (B, C, H, W), jnp.float32)

    # Deterministic synthetic parameters (shapes match nn.Conv2d weights/biases).
    params = {
        "w_1xK":   0.2 * jax.random.normal(ks[1], (Cs, large_kernel), jnp.float32),
        "b_1xK":   0.1 * jax.random.normal(ks[2], (Cs, 1), jnp.float32),
        "w_Kx1":   0.2 * jax.random.normal(ks[3], (Cs, large_kernel), jnp.float32),
        "b_Kx1":   0.1 * jax.random.normal(ks[4], (Cs, 1), jnp.float32),
        "conv1_w": 0.2 * jax.random.normal(ks[5], (C, C), jnp.float32),
        "conv1_b": 0.1 * jax.random.normal(ks[6], (C, 1), jnp.float32),
    }

    out = plkb_forward(x, params, large_kernel, Cs)
    out = jax.block_until_ready(out)

    ref = plkb_reference(x, params, large_kernel, Cs)
    assert out.shape == (B, C, H, W)
    max_err = float(jnp.max(jnp.abs(out - ref)))
    assert jnp.allclose(out, ref, atol=1e-4, rtol=1e-4), f"max_err={max_err}"

    print("KERNEL_OK")
</pallas_src>

<mosaic_0001>
module attributes {stable_mosaic.version = 11 : i64} {
  func.func @plkb_fused_kernel(%arg0: i32, %arg1: memref<2x8x256xf32, #tpu.memory_space<vmem>>, %arg2: memref<8x7xf32, #tpu.memory_space<vmem>>, %arg3: memref<8x1xf32, #tpu.memory_space<vmem>>, %arg4: memref<8x7xf32, #tpu.memory_space<vmem>>, %arg5: memref<8x1xf32, #tpu.memory_space<vmem>>, %arg6: memref<8x4xf32, #tpu.memory_space<vmem>>, %arg7: memref<8x4xf32, #tpu.memory_space<vmem>>, %arg8: memref<8x1xf32, #tpu.memory_space<vmem>>, %arg9: memref<2x8x256xf32, #tpu.memory_space<vmem>>, %arg10: memref<8x352xf32, #tpu.memory_space<vmem>>) attributes {dimension_semantics = [#tpu.dimension_semantics<parallel>], iteration_bounds = array<i64: 1>, scalar_prefetch = 0 : i64, scratch_operands = 1 : i64, tpu.core_type = #tpu.core_type<tc>, window_params = [{transform_indices = @transform_0, window_bounds = array<i64: 2, 8, 256>}, {pipeline_mode = #tpu.pipeline_mode<synchronous>, transform_indices = @transform_1, window_bounds = array<i64: 8, 7>}, {pipeline_mode = #tpu.pipeline_mode<synchronous>, transform_indices = @transform_2, window_bounds = array<i64: 8, 1>}, {pipeline_mode = #tpu.pipeline_mode<synchronous>, transform_indices = @transform_3, window_bounds = array<i64: 8, 7>}, {pipeline_mode = #tpu.pipeline_mode<synchronous>, transform_indices = @transform_4, window_bounds = array<i64: 8, 1>}, {pipeline_mode = #tpu.pipeline_mode<synchronous>, transform_indices = @transform_5, window_bounds = array<i64: 8, 4>}, {pipeline_mode = #tpu.pipeline_mode<synchronous>, transform_indices = @transform_6, window_bounds = array<i64: 8, 4>}, {pipeline_mode = #tpu.pipeline_mode<synchronous>, transform_indices = @transform_7, window_bounds = array<i64: 8, 1>}, {transform_indices = @transform_8, window_bounds = array<i64: 2, 8, 256>}]} {
    %cst = arith.constant 0.000000e+00 : f32
    %0 = vector.broadcast %cst : f32 to vector<8x48xf32>
    %c0 = arith.constant 0 : index
    %c0_0 = arith.constant 0 : index
    %1 = vector.load %arg10[%c0, %c0_0] : memref<8x352xf32, #tpu.memory_space<vmem>>, vector<8x48xf32>
    tpu.vector_store %arg10[%c0, %c0_0], %0 {strides = array<i32>} : memref<8x352xf32, #tpu.memory_space<vmem>>, vector<8x48xf32>,
    %cst_1 = arith.constant 0.000000e+00 : f32
    %2 = vector.broadcast %cst_1 : f32 to vector<8x48xf32>
    %c0_2 = arith.constant 0 : index
    %c304 = arith.constant 304 : index
    %3 = vector.load %arg10[%c0_2, %c304] : memref<8x352xf32, #tpu.memory_space<vmem>>, vector<8x48xf32>
    tpu.vector_store %arg10[%c0_2, %c304], %2 {strides = array<i32>} : memref<8x352xf32, #tpu.memory_space<vmem>>, vector<8x48xf32>,
    %c0_3 = arith.constant 0 : index
    %c0_4 = arith.constant 0 : index
    %c0_5 = arith.constant 0 : index
    %4 = vector.load %arg1[%c0_3, %c0_4, %c0_5] : memref<2x8x256xf32, #tpu.memory_space<vmem>>, vector<1x4x256xf32>
    %5 = vector.shape_cast %4 : vector<1x4x256xf32> to vector<4x256xf32>
    %c0_6 = arith.constant 0 : index
    %c48 = arith.constant 48 : index
    %6 = vector.load %arg10[%c0_6, %c48] : memref<8x352xf32, #tpu.memory_space<vmem>>, vector<4x256xf32>
    tpu.vector_store %arg10[%c0_6, %c48], %5 {strides = array<i32>} : memref<8x352xf32, #tpu.memory_space<vmem>>, vector<4x256xf32>,
    %c1 = arith.constant 1 : index
    %c0_7 = arith.constant 0 : index
    %c0_8 = arith.constant 0 : index
    %7 = vector.load %arg1[%c1, %c0_7, %c0_8] : memref<2x8x256xf32, #tpu.memory_space<vmem>>, vector<1x4x256xf32>
    %8 = vector.shape_cast %7 : vector<1x4x256xf32> to vector<4x256xf32>
    %c4 = arith.constant 4 : index
    %c48_9 = arith.constant 48 : index
    %9 = vector.load %arg10[%c4, %c48_9] : memref<8x352xf32, #tpu.memory_space<vmem>>, vector<4x256xf32>
    tpu.vector_store %arg10[%c4, %c48_9], %8 {strides = array<i32>} : memref<8x352xf32, #tpu.memory_space<vmem>>, vector<4x256xf32>,
    %c0_10 = arith.constant 0 : index
    %c48_11 = arith.constant 48 : index
    %10 = vector.load %arg10[%c0_10, %c48_11] : memref<8x352xf32, #tpu.memory_space<vmem>>, vector<8x256xf32>
    %c0_12 = arith.constant 0 : index
    %c0_13 = arith.constant 0 : index
    %11 = vector.load %arg2[%c0_12, %c0_13] : memref<8x7xf32, #tpu.memory_space<vmem>>, vector<8x7xf32>
    %12 = tpu.iota {dimensions = array<i32: 1>} : vector<1x256xi32>
    %c16_i32 = arith.constant 16 : i32
    %c0_i32 = arith.constant 0 : i32
    %13 = arith.cmpi eq, %c16_i32, %c0_i32 : i32
    %c1_i32 = arith.constant 1 : i32
    %14 = arith.select %13, %c1_i32, %c16_i32 : i32
    %15 = vector.broadcast %14 : i32 to vector<1x256xi32>
    %16 = arith.remsi %12, %15 : vector<1x256xi32>
    %c0_i32_14 = arith.constant 0 : i32
    %17 = vector.broadcast %c0_i32_14 : i32 to vector<1x256xi32>
    %18 = arith.cmpi ne, %16, %17 : vector<1x256xi32>
    %c0_i32_15 = arith.constant 0 : i32
    %19 = vector.broadcast %c0_i32_15 : i32 to vector<1x256xi32>
    %20 = arith.cmpi slt, %16, %19 : vector<1x256xi32>
    %c0_i32_16 = arith.constant 0 : i32
    %21 = arith.cmpi slt, %14, %c0_i32_16 : i32
    %22 = vector.broadcast %21 : i1 to vector<1x256xi1>
    %23 = vector.broadcast %22 : vector<1x256xi1> to vector<1x256xi1>
    %24 = arith.xori %20, %23 : vector<1x256xi1>
    %25 = arith.andi %24, %18 : vector<1x256xi1>
    %26 = vector.broadcast %14 : i32 to vector<1x256xi32>
    %27 = arith.addi %16, %26 : vector<1x256xi32>
    %28 = arith.select %25, %27, %16 : vector<1x256xi1>, vector<1x256xi32>
    %29 = vector.extract_strided_slice %11 {offsets = [0, 3], sizes = [8, 1], strides = [1, 1]} : vector<8x7xf32> to vector<8x1xf32>
    %30 = vector.broadcast %29 : vector<8x1xf32> to vector<8x256xf32>
    %31 = arith.mulf %30, %10 : vector<8x256xf32>
    %c3_i32 = arith.constant 3 : i32
    %32 = tpu.dynamic_rotate %10 by %c3_i32 dim 1 : vector<8x256xf32>, i32 -> vector<8x256xf32>
    %c3_i32_17 = arith.constant 3 : i32
    %33 = vector.broadcast %c3_i32_17 : i32 to vector<1x256xi32>
    %34 = arith.cmpi sge, %28, %33 : vector<1x256xi32>
    %35 = arith.extui %34 : vector<1x256xi1> to vector<1x256xi32>
    %36 = arith.sitofp %35 : vector<1x256xi32> to vector<1x256xf32>
    %37 = vector.extract_strided_slice %11 {offsets = [0, 0], sizes = [8, 1], strides = [1, 1]} : vector<8x7xf32> to vector<8x1xf32>
    %38 = vector.broadcast %36 : vector<1x256xf32> to vector<8x256xf32>
    %39 = arith.mulf %32, %38 : vector<8x256xf32>
    %40 = vector.broadcast %37 : vector<8x1xf32> to vector<8x256xf32>
    %41 = arith.mulf %40, %39 : vector<8x256xf32>
    %42 = arith.addf %31, %41 : vector<8x256xf32>
    %c2_i32 = arith.constant 2 : i32
    %43 = tpu.dynamic_rotate %10 by %c2_i32 dim 1 : vector<8x256xf32>, i32 -> vector<8x256xf32>
    %c2_i32_18 = arith.constant 2 : i32
    %44 = vector.broadcast %c2_i32_18 : i32 to vector<1x256xi32>
    %45 = arith.cmpi sge, %28, %44 : vector<1x256xi32>
    %46 = arith.extui %45 : vector<1x256xi1> to vector<1x256xi32>
    %47 = arith.sitofp %46 : vector<1x256xi32> to vector<1x256xf32>
    %48 = vector.extract_strided_slice %11 {offsets = [0, 1], sizes = [8, 1], strides = [1, 1]} : vector<8x7xf32> to vector<8x1xf32>
    %49 = vector.broadcast %47 : vector<1x256xf32> to vector<8x256xf32>
    %50 = arith.mulf %43, %49 : vector<8x256xf32>
    %51 = vector.broadcast %48 : vector<8x1xf32> to vector<8x256xf32>
    %52 = arith.mulf %51, %50 : vector<8x256xf32>
    %53 = arith.addf %42, %52 : vector<8x256xf32>
    %c1_i32_19 = arith.constant 1 : i32
    %54 = tpu.dynamic_rotate %10 by %c1_i32_19 dim 1 : vector<8x256xf32>, i32 -> vector<8x256xf32>
    %c1_i32_20 = arith.constant 1 : i32
    %55 = vector.broadcast %c1_i32_20 : i32 to vector<1x256xi32>
    %56 = arith.cmpi sge, %28, %55 : vector<1x256xi32>
    %57 = arith.extui %56 : vector<1x256xi1> to vector<1x256xi32>
    %58 = arith.sitofp %57 : vector<1x256xi32> to vector<1x256xf32>
    %59 = vector.extract_strided_slice %11 {offsets = [0, 2], sizes = [8, 1], strides = [1, 1]} : vector<8x7xf32> to vector<8x1xf32>
    %60 = vector.broadcast %58 : vector<1x256xf32> to vector<8x256xf32>
    %61 = arith.mulf %54, %60 : vector<8x256xf32>
    %62 = vector.broadcast %59 : vector<8x1xf32> to vector<8x256xf32>
    %63 = arith.mulf %62, %61 : vector<8x256xf32>
    %64 = arith.addf %53, %63 : vector<8x256xf32>
    %c255_i32 = arith.constant 255 : i32
    %65 = tpu.dynamic_rotate %10 by %c255_i32 dim 1 : vector<8x256xf32>, i32 -> vector<8x256xf32>
    %c15_i32 = arith.constant 15 : i32
    %66 = vector.broadcast %c15_i32 : i32 to vector<1x256xi32>
    %67 = arith.cmpi slt, %28, %66 : vector<1x256xi32>
    %68 = arith.extui %67 : vector<1x256xi1> to vector<1x256xi32>
    %69 = arith.sitofp %68 : vector<1x256xi32> to vector<1x256xf32>
    %70 = vector.extract_strided_slice %11 {offsets = [0, 4], sizes = [8, 1], strides = [1, 1]} : vector<8x7xf32> to vector<8x1xf32>
    %71 = vector.broadcast %69 : vector<1x256xf32> to vector<8x256xf32>
    %72 = arith.mulf %65, %71 : vector<8x256xf32>
    %73 = vector.broadcast %70 : vector<8x1xf32> to vector<8x256xf32>
    %74 = arith.mulf %73, %72 : vector<8x256xf32>
    %75 = arith.addf %64, %74 : vector<8x256xf32>
    %c254_i32 = arith.constant 254 : i32
    %76 = tpu.dynamic_rotate %10 by %c254_i32 dim 1 : vector<8x256xf32>, i32 -> vector<8x256xf32>
    %c14_i32 = arith.constant 14 : i32
    %77 = vector.broadcast %c14_i32 : i32 to vector<1x256xi32>
    %78 = arith.cmpi slt, %28, %77 : vector<1x256xi32>
    %79 = arith.extui %78 : vector<1x256xi1> to vector<1x256xi32>
    %80 = arith.sitofp %79 : vector<1x256xi32> to vector<1x256xf32>
    %81 = vector.extract_strided_slice %11 {offsets = [0, 5], sizes = [8, 1], strides = [1, 1]} : vector<8x7xf32> to vector<8x1xf32>
    %82 = vector.broadcast %80 : vector<1x256xf32> to vector<8x256xf32>
    %83 = arith.mulf %76, %82 : vector<8x256xf32>
    %84 = vector.broadcast %81 : vector<8x1xf32> to vector<8x256xf32>
    %85 = arith.mulf %84, %83 : vector<8x256xf32>
    %86 = arith.addf %75, %85 : vector<8x256xf32>
    %c253_i32 = arith.constant 253 : i32
    %87 = tpu.dynamic_rotate %10 by %c253_i32 dim 1 : vector<8x256xf32>, i32 -> vector<8x256xf32>
    %c13_i32 = arith.constant 13 : i32
    %88 = vector.broadcast %c13_i32 : i32 to vector<1x256xi32>
    %89 = arith.cmpi slt, %28, %88 : vector<1x256xi32>
    %90 = arith.extui %89 : vector<1x256xi1> to vector<1x256xi32>
    %91 = arith.sitofp %90 : vector<1x256xi32> to vector<1x256xf32>
    %92 = vector.extract_strided_slice %11 {offsets = [0, 6], sizes = [8, 1], strides = [1, 1]} : vector<8x7xf32> to vector<8x1xf32>
    %93 = vector.broadcast %91 : vector<1x256xf32> to vector<8x256xf32>
    %94 = arith.mulf %87, %93 : vector<8x256xf32>
    %95 = vector.broadcast %92 : vector<8x1xf32> to vector<8x256xf32>
    %96 = arith.mulf %95, %94 : vector<8x256xf32>
    %97 = arith.addf %86, %96 : vector<8x256xf32>
    %c0_21 = arith.constant 0 : index
    %c0_22 = arith.constant 0 : index
    %98 = vector.load %arg3[%c0_21, %c0_22] : memref<8x1xf32, #tpu.memory_space<vmem>>, vector<8x1xf32>
    %99 = vector.broadcast %98 : vector<8x1xf32> to vector<8x256xf32>
    %100 = arith.addf %97, %99 : vector<8x256xf32>
    %c0_23 = arith.constant 0 : index
    %c48_24 = arith.constant 48 : index
    %101 = vector.load %arg10[%c0_23, %c48_24] : memref<8x352xf32, #tpu.memory_space<vmem>>, vector<8x256xf32>
    tpu.vector_store %arg10[%c0_23, %c48_24], %100 {strides = array<i32>} : memref<8x352xf32, #tpu.memory_space<vmem>>, vector<8x256xf32>,
    %c0_25 = arith.constant 0 : index
    %c0_26 = arith.constant 0 : index
    %102 = vector.load %arg4[%c0_25, %c0_26] : memref<8x7xf32, #tpu.memory_space<vmem>>, vector<8x7xf32>
    %103 = vector.extract_strided_slice %102 {offsets = [0, 3], sizes = [8, 1], strides = [1, 1]} : vector<8x7xf32> to vector<8x1xf32>
    %104 = vector.broadcast %103 : vector<8x1xf32> to vector<8x256xf32>
    %105 = arith.mulf %104, %100 : vector<8x256xf32>
    %c0_27 = arith.constant 0 : index
    %c0_28 = arith.constant 0 : index
    %106 = vector.load %arg10[%c0_27, %c0_28] : memref<8x352xf32, #tpu.memory_space<vmem>>, vector<8x256xf32>
    %107 = vector.extract_strided_slice %102 {offsets = [0, 0], sizes = [8, 1], strides = [1, 1]} : vector<8x7xf32> to vector<8x1xf32>
    %108 = vector.broadcast %107 : vector<8x1xf32> to vector<8x256xf32>
    %109 = arith.mulf %108, %106 : vector<8x256xf32>
    %110 = arith.addf %105, %109 : vector<8x256xf32>
    %c0_29 = arith.constant 0 : index
    %c16 = arith.constant 16 : index
    %111 = vector.load %arg10[%c0_29, %c16] : memref<8x352xf32, #tpu.memory_space<vmem>>, vector<8x256xf32>
    %112 = vector.extract_strided_slice %102 {offsets = [0, 1], sizes = [8, 1], strides = [1, 1]} : vector<8x7xf32> to vector<8x1xf32>
    %113 = vector.broadcast %112 : vector<8x1xf32> to vector<8x256xf32>
    %114 = arith.mulf %113, %111 : vector<8x256xf32>
    %115 = arith.addf %110, %114 : vector<8x256xf32>
    %c0_30 = arith.constant 0 : index
    %c32 = arith.constant 32 : index
    %116 = vector.load %arg10[%c0_30, %c32] : memref<8x352xf32, #tpu.memory_space<vmem>>, vector<8x256xf32>
    %117 = vector.extract_strided_slice %102 {offsets = [0, 2], sizes = [8, 1], strides = [1, 1]} : vector<8x7xf32> to vector<8x1xf32>
    %118 = vector.broadcast %117 : vector<8x1xf32> to vector<8x256xf32>
    %119 = arith.mulf %118, %116 : vector<8x256xf32>
    %120 = arith.addf %115, %119 : vector<8x256xf32>
    %c0_31 = arith.constant 0 : index
    %c64 = arith.constant 64 : index
    %121 = vector.load %arg10[%c0_31, %c64] : memref<8x352xf32, #tpu.memory_space<vmem>>, vector<8x256xf32>
    %122 = vector.extract_strided_slice %102 {offsets = [0, 4], sizes = [8, 1], strides = [1, 1]} : vector<8x7xf32> to vector<8x1xf32>
    %123 = vector.broadcast %122 : vector<8x1xf32> to vector<8x256xf32>
    %124 = arith.mulf %123, %121 : vector<8x256xf32>
    %125 = arith.addf %120, %124 : vector<8x256xf32>
    %c0_32 = arith.constant 0 : index
    %c80 = arith.constant 80 : index
    %126 = vector.load %arg10[%c0_32, %c80] : memref<8x352xf32, #tpu.memory_space<vmem>>, vector<8x256xf32>
    %127 = vector.extract_strided_slice %102 {offsets = [0, 5], sizes = [8, 1], strides = [1, 1]} : vector<8x7xf32> to vector<8x1xf32>
    %128 = vector.broadcast %127 : vector<8x1xf32> to vector<8x256xf32>
    %129 = arith.mulf %128, %126 : vector<8x256xf32>
    %130 = arith.addf %125, %129 : vector<8x256xf32>
    %c0_33 = arith.constant 0 : index
    %c96 = arith.constant 96 : index
    %131 = vector.load %arg10[%c0_33, %c96] : memref<8x352xf32, #tpu.memory_space<vmem>>, vector<8x256xf32>
    %132 = vector.extract_strided_slice %102 {offsets = [0, 6], sizes = [8, 1], strides = [1, 1]} : vector<8x7xf32> to vector<8x1xf32>
    %133 = vector.broadcast %132 : vector<8x1xf32> to vector<8x256xf32>
    %134 = arith.mulf %133, %131 : vector<8x256xf32>
    %135 = arith.addf %130, %134 : vector<8x256xf32>
    %c0_34 = arith.constant 0 : index
    %c0_35 = arith.constant 0 : index
    %136 = vector.load %arg5[%c0_34, %c0_35] : memref<8x1xf32, #tpu.memory_space<vmem>>, vector<8x1xf32>
    %137 = vector.broadcast %136 : vector<8x1xf32> to vector<8x256xf32>
    %138 = arith.addf %135, %137 : vector<8x256xf32>
    %c0_36 = arith.constant 0 : index
    %c0_37 = arith.constant 0 : index
    %139 = vector.load %arg6[%c0_36, %c0_37] : memref<8x4xf32, #tpu.memory_space<vmem>>, vector<8x4xf32>
    %c0_38 = arith.constant 0 : index
    %c0_39 = arith.constant 0 : index
    %140 = vector.load %arg7[%c0_38, %c0_39] : memref<8x4xf32, #tpu.memory_space<vmem>>, vector<8x4xf32>
    %c0_40 = arith.constant 0 : index
    %c0_41 = arith.constant 0 : index
    %141 = vector.load %arg8[%c0_40, %c0_41] : memref<8x1xf32, #tpu.memory_space<vmem>>, vector<8x1xf32>
    %142 = vector.extract_strided_slice %138 {offsets = [0, 0], sizes = [4, 256], strides = [1, 1]} : vector<8x256xf32> to vector<4x256xf32>
    %c0_42 = arith.constant 0 : index
    %c4_43 = arith.constant 4 : index
    %c0_44 = arith.constant 0 : index
    %143 = vector.load %arg1[%c0_42, %c4_43, %c0_44] : memref<2x8x256xf32, #tpu.memory_space<vmem>>, vector<1x4x256xf32>
    %144 = vector.shape_cast %143 : vector<1x4x256xf32> to vector<4x256xf32>
    %cst_45 = arith.constant dense<0.000000e+00> : vector<8x256xf32>
    %145 = tpu.matmul %139, %142, %cst_45 {dimension_numbers = #tpu.dot_dimension_numbers<[1], [0], [0], [1], [0, 0, 1, 1], [], []>} : vector<8x4xf32>, vector<4x256xf32>, vector<8x256xf32> -> vector<8x256xf32>
    %cst_46 = arith.constant dense<0.000000e+00> : vector<8x256xf32>
    %146 = tpu.matmul %140, %144, %cst_46 {dimension_numbers = #tpu.dot_dimension_numbers<[1], [0], [0], [1], [0, 0, 1, 1], [], []>} : vector<8x4xf32>, vector<4x256xf32>, vector<8x256xf32> -> vector<8x256xf32>
    %147 = arith.addf %145, %146 : vector<8x256xf32>
    %148 = vector.broadcast %141 : vector<8x1xf32> to vector<8x256xf32>
    %149 = arith.addf %147, %148 : vector<8x256xf32>
    %cst_47 = arith.constant 5.000000e-01 : f32
    %150 = vector.broadcast %cst_47 : f32 to vector<8x256xf32>
    %151 = arith.mulf %150, %149 : vector<8x256xf32>
    %cst_48 = arith.constant 0.707106769 : f32
    %152 = vector.broadcast %cst_48 : f32 to vector<8x256xf32>
    %153 = arith.mulf %149, %152 : vector<8x256xf32>
    %cst_49 = arith.constant 0.000000e+00 : f32
    %154 = vector.broadcast %cst_49 : f32 to vector<8x256xf32>
    %155 = arith.cmpf oge, %153, %154 : vector<8x256xf32>
    %cst_50 = arith.constant 1.000000e+00 : f32
    %cst_51 = arith.constant -1.000000e+00 : f32
    %156 = vector.broadcast %cst_50 : f32 to vector<8x256xf32>
    %157 = vector.broadcast %cst_51 : f32 to vector<8x256xf32>
    %158 = arith.select %155, %156, %157 : vector<8x256xi1>, vector<8x256xf32>
    %159 = math.absf %153 : vector<8x256xf32>
    %cst_52 = arith.constant 0.327591091 : f32
    %160 = vector.broadcast %cst_52 : f32 to vector<8x256xf32>
    %161 = arith.mulf %160, %159 : vector<8x256xf32>
    %cst_53 = arith.constant 1.000000e+00 : f32
    %162 = vector.broadcast %cst_53 : f32 to vector<8x256xf32>
    %163 = arith.addf %162, %161 : vector<8x256xf32>
    %cst_54 = arith.constant 1.000000e+00 : f32
    %164 = vector.broadcast %cst_54 : f32 to vector<8x256xf32>
    %165 = arith.divf %164, %163 : vector<8x256xf32>
    %cst_55 = arith.constant 1.06140542 : f32
    %166 = vector.broadcast %cst_55 : f32 to vector<8x256xf32>
    %167 = arith.mulf %166, %165 : vector<8x256xf32>
    %cst_56 = arith.constant -1.45315206 : f32
    %168 = vector.broadcast %cst_56 : f32 to vector<8x256xf32>
    %169 = arith.addf %167, %168 : vector<8x256xf32>
    %170 = arith.mulf %169, %165 : vector<8x256xf32>
    %cst_57 = arith.constant 1.42141378 : f32
    %171 = vector.broadcast %cst_57 : f32 to vector<8x256xf32>
    %172 = arith.addf %170, %171 : vector<8x256xf32>
    %173 = arith.mulf %172, %165 : vector<8x256xf32>
    %cst_58 = arith.constant -0.284496725 : f32
    %174 = vector.broadcast %cst_58 : f32 to vector<8x256xf32>
    %175 = arith.addf %173, %174 : vector<8x256xf32>
    %176 = arith.mulf %175, %165 : vector<8x256xf32>
    %cst_59 = arith.constant 0.254829586 : f32
    %177 = vector.broadcast %cst_59 : f32 to vector<8x256xf32>
    %178 = arith.addf %176, %177 : vector<8x256xf32>
    %179 = arith.mulf %178, %165 : vector<8x256xf32>
    %cst_60 = arith.constant 0.000000e+00 : f32
    %180 = vector.broadcast %cst_60 : f32 to vector<8x256xf32>
    %181 = arith.subf %180, %159 : vector<8x256xf32>
    %182 = arith.mulf %181, %159 : vector<8x256xf32>
    %183 = math.exp %182 : vector<8x256xf32>
    %184 = arith.mulf %179, %183 : vector<8x256xf32>
    %cst_61 = arith.constant 1.000000e+00 : f32
    %185 = vector.broadcast %cst_61 : f32 to vector<8x256xf32>
    %186 = arith.subf %185, %184 : vector<8x256xf32>
    %187 = arith.mulf %158, %186 : vector<8x256xf32>
    %cst_62 = arith.constant 1.000000e+00 : f32
    %188 = vector.broadcast %cst_62 : f32 to vector<8x256xf32>
    %189 = arith.addf %188, %187 : vector<8x256xf32>
    %190 = arith.mulf %151, %189 : vector<8x256xf32>
    %c0_63 = arith.constant 0 : index
    %c0_64 = arith.constant 0 : index
    %c0_65 = arith.constant 0 : index
    %191 = vector.load %arg9[%c0_63, %c0_64, %c0_65] : memref<2x8x256xf32, #tpu.memory_space<vmem>>, vector<1x8x256xf32>
    %192 = vector.shape_cast %191 : vector<1x8x256xf32> to vector<8x256xf32>
    %193 = vector.shape_cast %190 : vector<8x256xf32> to vector<1x8x256xf32>
    tpu.vector_store %arg9[%c0_63, %c0_64, %c0_65], %193 {strides = array<i32>} : memref<2x8x256xf32, #tpu.memory_space<vmem>>, vector<1x8x256xf32>,
    %194 = vector.extract_strided_slice %138 {offsets = [4, 0], sizes = [4, 256], strides = [1, 1]} : vector<8x256xf32> to vector<4x256xf32>
    %c1_66 = arith.constant 1 : index
    %c4_67 = arith.constant 4 : index
    %c0_68 = arith.constant 0 : index
    %195 = vector.load %arg1[%c1_66, %c4_67, %c0_68] : memref<2x8x256xf32, #tpu.memory_space<vmem>>, vector<1x4x256xf32>
    %196 = vector.shape_cast %195 : vector<1x4x256xf32> to vector<4x256xf32>
    %cst_69 = arith.constant dense<0.000000e+00> : vector<8x256xf32>
    %197 = tpu.matmul %139, %194, %cst_69 {dimension_numbers = #tpu.dot_dimension_numbers<[1], [0], [0], [1], [0, 0, 1, 1], [], []>} : vector<8x4xf32>, vector<4x256xf32>, vector<8x256xf32> -> vector<8x256xf32>
    %cst_70 = arith.constant dense<0.000000e+00> : vector<8x256xf32>
    %198 = tpu.matmul %140, %196, %cst_70 {dimension_numbers = #tpu.dot_dimension_numbers<[1], [0], [0], [1], [0, 0, 1, 1], [], []>} : vector<8x4xf32>, vector<4x256xf32>, vector<8x256xf32> -> vector<8x256xf32>
    %199 = arith.addf %197, %198 : vector<8x256xf32>
    %200 = vector.broadcast %141 : vector<8x1xf32> to vector<8x256xf32>
    %201 = arith.addf %199, %200 : vector<8x256xf32>
    %cst_71 = arith.constant 5.000000e-01 : f32
    %202 = vector.broadcast %cst_71 : f32 to vector<8x256xf32>
    %203 = arith.mulf %202, %201 : vector<8x256xf32>
    %cst_72 = arith.constant 0.707106769 : f32
    %204 = vector.broadcast %cst_72 : f32 to vector<8x256xf32>
    %205 = arith.mulf %201, %204 : vector<8x256xf32>
    %cst_73 = arith.constant 0.000000e+00 : f32
    %206 = vector.broadcast %cst_73 : f32 to vector<8x256xf32>
    %207 = arith.cmpf oge, %205, %206 : vector<8x256xf32>
    %cst_74 = arith.constant 1.000000e+00 : f32
    %cst_75 = arith.constant -1.000000e+00 : f32
    %208 = vector.broadcast %cst_74 : f32 to vector<8x256xf32>
    %209 = vector.broadcast %cst_75 : f32 to vector<8x256xf32>
    %210 = arith.select %207, %208, %209 : vector<8x256xi1>, vector<8x256xf32>
    %211 = math.absf %205 : vector<8x256xf32>
    %cst_76 = arith.constant 0.327591091 : f32
    %212 = vector.broadcast %cst_76 : f32 to vector<8x256xf32>
    %213 = arith.mulf %212, %211 : vector<8x256xf32>
    %cst_77 = arith.constant 1.000000e+00 : f32
    %214 = vector.broadcast %cst_77 : f32 to vector<8x256xf32>
    %215 = arith.addf %214, %213 : vector<8x256xf32>
    %cst_78 = arith.constant 1.000000e+00 : f32
    %216 = vector.broadcast %cst_78 : f32 to vector<8x256xf32>
    %217 = arith.divf %216, %215 : vector<8x256xf32>
    %cst_79 = arith.constant 1.06140542 : f32
    %218 = vector.broadcast %cst_79 : f32 to vector<8x256xf32>
    %219 = arith.mulf %218, %217 : vector<8x256xf32>
    %cst_80 = arith.constant -1.45315206 : f32
    %220 = vector.broadcast %cst_80 : f32 to vector<8x256xf32>
    %221 = arith.addf %219, %220 : vector<8x256xf32>
    %222 = arith.mulf %221, %217 : vector<8x256xf32>
    %cst_81 = arith.constant 1.42141378 : f32
    %223 = vector.broadcast %cst_81 : f32 to vector<8x256xf32>
    %224 = arith.addf %222, %223 : vector<8x256xf32>
    %225 = arith.mulf %224, %217 : vector<8x256xf32>
    %cst_82 = arith.constant -0.284496725 : f32
    %226 = vector.broadcast %cst_82 : f32 to vector<8x256xf32>
    %227 = arith.addf %225, %226 : vector<8x256xf32>
    %228 = arith.mulf %227, %217 : vector<8x256xf32>
    %cst_83 = arith.constant 0.254829586 : f32
    %229 = vector.broadcast %cst_83 : f32 to vector<8x256xf32>
    %230 = arith.addf %228, %229 : vector<8x256xf32>
    %231 = arith.mulf %230, %217 : vector<8x256xf32>
    %cst_84 = arith.constant 0.000000e+00 : f32
    %232 = vector.broadcast %cst_84 : f32 to vector<8x256xf32>
    %233 = arith.subf %232, %211 : vector<8x256xf32>
    %234 = arith.mulf %233, %211 : vector<8x256xf32>
    %235 = math.exp %234 : vector<8x256xf32>
    %236 = arith.mulf %231, %235 : vector<8x256xf32>
    %cst_85 = arith.constant 1.000000e+00 : f32
    %237 = vector.broadcast %cst_85 : f32 to vector<8x256xf32>
    %238 = arith.subf %237, %236 : vector<8x256xf32>
    %239 = arith.mulf %210, %238 : vector<8x256xf32>
    %cst_86 = arith.constant 1.000000e+00 : f32
    %240 = vector.broadcast %cst_86 : f32 to vector<8x256xf32>
    %241 = arith.addf %240, %239 : vector<8x256xf32>
    %242 = arith.mulf %203, %241 : vector<8x256xf32>
    %c1_87 = arith.constant 1 : index
    %c0_88 = arith.constant 0 : index
    %c0_89 = arith.constant 0 : index
    %243 = vector.load %arg9[%c1_87, %c0_88, %c0_89] : memref<2x8x256xf32, #tpu.memory_space<vmem>>, vector<1x8x256xf32>
    %244 = vector.shape_cast %243 : vector<1x8x256xf32> to vector<8x256xf32>
    %245 = vector.shape_cast %242 : vector<8x256xf32> to vector<1x8x256xf32>
    tpu.vector_store %arg9[%c1_87, %c0_88, %c0_89], %245 {strides = array<i32>} : memref<2x8x256xf32, #tpu.memory_space<vmem>>, vector<1x8x256xf32>,
    return
  }
  func.func @transform_0(%arg0: i32) -> (i32, i32, i32) {
    %c0_i32 = arith.constant 0 : i32
    %c0_i32_0 = arith.constant 0 : i32
    %c0_i32_1 = arith.constant 0 : i32
    return %arg0, %c0_i32, %c0_i32_0 : i32, i32, i32
  }
  func.func @transform_1(%arg0: i32) -> (i32, i32) {
    %c0_i32 = arith.constant 0 : i32
    %c0_i32_0 = arith.constant 0 : i32
    %c0_i32_1 = arith.constant 0 : i32
    return %c0_i32, %c0_i32_0 : i32, i32
  }
  func.func @transform_2(%arg0: i32) -> (i32, i32) {
    %c0_i32 = arith.constant 0 : i32
    %c0_i32_0 = arith.constant 0 : i32
    %c0_i32_1 = arith.constant 0 : i32
    return %c0_i32, %c0_i32_0 : i32, i32
  }
  func.func @transform_3(%arg0: i32) -> (i32, i32) {
    %c0_i32 = arith.constant 0 : i32
    %c0_i32_0 = arith.constant 0 : i32
    %c0_i32_1 = arith.constant 0 : i32
    return %c0_i32, %c0_i32_0 : i32, i32
  }
  func.func @transform_4(%arg0: i32) -> (i32, i32) {
    %c0_i32 = arith.constant 0 : i32
    %c0_i32_0 = arith.constant 0 : i32
    %c0_i32_1 = arith.constant 0 : i32
    return %c0_i32, %c0_i32_0 : i32, i32
  }
  func.func @transform_5(%arg0: i32) -> (i32, i32) {
    %c0_i32 = arith.constant 0 : i32
    %c0_i32_0 = arith.constant 0 : i32
    %c0_i32_1 = arith.constant 0 : i32
    return %c0_i32, %c0_i32_0 : i32, i32
  }
  func.func @transform_6(%arg0: i32) -> (i32, i32) {
    %c0_i32 = arith.constant 0 : i32
    %c0_i32_0 = arith.constant 0 : i32
    %c0_i32_1 = arith.constant 0 : i32
    return %c0_i32, %c0_i32_0 : i32, i32
  }
  func.func @transform_7(%arg0: i32) -> (i32, i32) {
    %c0_i32 = arith.constant 0 : i32
    %c0_i32_0 = arith.constant 0 : i32
    %c0_i32_1 = arith.constant 0 : i32
    return %c0_i32, %c0_i32_0 : i32, i32
  }
  func.func @transform_8(%arg0: i32) -> (i32, i32, i32) {
    %c0_i32 = arith.constant 0 : i32
    %c0_i32_0 = arith.constant 0 : i32
    %c0_i32_1 = arith.constant 0 : i32
    return %arg0, %c0_i32, %c0_i32_0 : i32, i32, i32
  }
}

</mosaic_0001>

<llo_original>
// kernel: tpu_custom_call.1
$region0: #{tpu_custom_call.1}
  #allocation0 [shape = 'u32[]', space=smem, size = 0x4, offset = 0x4, fixed_abs, tag = 'smem constant byte address 0x4 - core index']
  #allocation1 [shape = 'u32[144,128]{1,0:T(1,128)}', space=vmem, size = 0x12000, scoped, tag = 'internal scratch']
  #allocation2 [shape = 'f32[8,352]{1,0:T(8,128)}', space=vmem, size = 0x3000, scoped, tag = 'scratch operand']
  %s0 = inlined_call_operand.vmem [shape: f32[2,8,256], index: 0, kind: input, shape index: {}]
  %s1 = inlined_call_operand.vmem [shape: f32[8,7], index: 1, kind: input, shape index: {}]
  %s2 = inlined_call_operand.vmem [shape: f32[8,1], index: 2, kind: input, shape index: {}]
  %s3 = inlined_call_operand.vmem [shape: f32[8,7], index: 3, kind: input, shape index: {}]
  %s4 = inlined_call_operand.vmem [shape: f32[8,1], index: 4, kind: input, shape index: {}]
  %s5 = inlined_call_operand.vmem [shape: f32[8,4], index: 5, kind: input, shape index: {}]
  %s6 = inlined_call_operand.vmem [shape: f32[8,4], index: 6, kind: input, shape index: {}]
  %s7 = inlined_call_operand.vmem [shape: f32[8,1], index: 7, kind: input, shape index: {}]
  %s8 = inlined_call_operand.hbm [shape: f32[2,8,256], index: 8, kind: output, shape index: {}]
  %s9 = sld [smem:[#allocation0]]
  $region42: #{tpu_custom_call.1} parent=0
    _
  %s11 = ssub.s32 1, %s9
  %s12 = scalar_select 0, %s11, %s9
  $region1: #{tpu_custom_call.1} parent=0
    #allocation3 [shape = 'u8[16384]{0}', space=vmem, size = 0x4000, scoped, tag = 'output window, operand 0, single buffered']
    #allocation4 [shape = 's32[1]{0}', space=sflag, size = 0x4, scoped, tag = 'scoped memory for tpu_custom_call.1']
    %13 = vsyncpa [#allocation4], 0
    // Predicated region
    $region2: #{tpu_custom_call.1} parent=1 // pred_check
      _
    $region3: #{tpu_custom_call.1} parent=1 // pred_check_branch
      %15 = sbr.rel (0) target = $region5
    $region4: #{tpu_custom_call.1} parent=1 // pred_region
      _
    $region5: #{tpu_custom_call.1} parent=1 // pred_fallthru
      _
    // Predicated region
    $region6: #{tpu_custom_call.1} parent=1 // pred_check
      _
    $region7: #{tpu_custom_call.1} parent=1 // pred_check_branch
      %17 = sbr.rel (0) target = $region9
    $region8: #{tpu_custom_call.1} parent=1 // pred_region
      _
    $region9: #{tpu_custom_call.1} parent=1 // pred_fallthru
      _
    // Predicated region
    $region10: #{tpu_custom_call.1} parent=1 // pred_check
      _
    $region11: #{tpu_custom_call.1} parent=1 // pred_check_branch
      %19 = sbr.rel (0) target = $region13
    $region12: #{tpu_custom_call.1} parent=1 // pred_region
      _
    $region13: #{tpu_custom_call.1} parent=1 // pred_fallthru
      _
    // Predicated region
    $region14: #{tpu_custom_call.1} parent=1 // pred_check
      _
    $region15: #{tpu_custom_call.1} parent=1 // pred_check_branch
      %21 = sbr.rel (0) target = $region17
    $region16: #{tpu_custom_call.1} parent=1 // pred_region
      _
    $region17: #{tpu_custom_call.1} parent=1 // pred_fallthru
      _
    // Predicated region
    $region18: #{tpu_custom_call.1} parent=1 // pred_check
      _
    $region19: #{tpu_custom_call.1} parent=1 // pred_check_branch
      %23 = sbr.rel (0) target = $region21
    $region20: #{tpu_custom_call.1} parent=1 // pred_region
      _
    $region21: #{tpu_custom_call.1} parent=1 // pred_fallthru
      _
    // Predicated region
    $region22: #{tpu_custom_call.1} parent=1 // pred_check
      _
    $region23: #{tpu_custom_call.1} parent=1 // pred_check_branch
      %25 = sbr.rel (0) target = $region25
    $region24: #{tpu_custom_call.1} parent=1 // pred_region
      _
    $region25: #{tpu_custom_call.1} parent=1 // pred_fallthru
      _
    // Predicated region
    $region26: #{tpu_custom_call.1} parent=1 // pred_check
      _
    $region27: #{tpu_custom_call.1} parent=1 // pred_check_branch
      %27 = sbr.rel (0) target = $region29
    $region28: #{tpu_custom_call.1} parent=1 // pred_region
      _
    $region29: #{tpu_custom_call.1} parent=1 // pred_fallthru
      _
    // Predicated region
    $region30: #{tpu_custom_call.1} parent=1 // pred_check
      _
    $region31: #{tpu_custom_call.1} parent=1 // pred_check_branch
      %29 = sbr.rel (0) target = $region33
    $region32: #{tpu_custom_call.1} parent=1 // pred_region
      _
    $region33: #{tpu_custom_call.1} parent=1 // pred_fallthru
      _
    %vm30 = vcmask 392192
    %31 = vst.msk [vmem:[#allocation2] sm:$0xff] %vm30, 0.0
    %vm32 = vcmask 785792
    %33 = vst.msk [vmem:[#allocation2 + $0x10] sm:$0xff] %vm32, 0.0
    %v34 = vld [vmem:[%s0] sm:$0xf]
    %v35 = vld [vmem:[%s0 + $0x8] sm:$0xf]
    %38 = vrot.lane.b32.xlu0 %v34, 48
    %v39 = vpop.permute.xlu0 %38
    %40 = vrot.lane.b32.xlu0 %v35, 48
    %v41 = vpop.permute.xlu0 %40
    %v42 = vsel %vm30, %v39, %v41
    %vm46 = vcmask 1043840
    %47 = vst.msk [vmem:[#allocation2] sm:$0xf] %vm46, %v39
    %48 = vst [vmem:[#allocation2 + $0x8] sm:$0xf] %v42
    %vm49 = vcmask 388096
    %50 = vst.msk [vmem:[#allocation2 + $0x10] sm:$0xf] %vm49, %v41
    %s51 = scalar_lea.vmem %s0, 16
    %v52 = vld [vmem:[%s51] sm:$0xf]
    %v53 = vld [vmem:[%s51 + $0x8] sm:$0xf]
    %v56 = vrot.slane %v52, 4
    %v57 = vrot.slane %v53, 4
    %58 = vrot.lane.b32.xlu0 %v56, 48
    %v59 = vpop.permute.xlu0 %58
    %60 = vrot.lane.b32.xlu0 %v57, 48
    %v61 = vpop.permute.xlu0 %60
    %v62 = vsel %vm30, %v59, %v61
    %vm66 = vcmask 1047940
    %67 = vst.msk [vmem:[#allocation2] sm:$0xf0] %vm66, %v59
    %68 = vst [vmem:[#allocation2 + $0x8] sm:$0xf0] %v62
    %vm69 = vcmask 392196
    %70 = vst.msk [vmem:[#allocation2 + $0x10] sm:$0xf0] %vm69, %v61
    %v71 = vld [vmem:[#allocation2] sm:$0xff]
    %v72 = vld [vmem:[#allocation2 + $0x8] sm:$0xff]
    %v73 = vld [vmem:[#allocation2 + $0x10] sm:$0xff]
    %v74 = vld [vmem:[%s1] sm:$0xff]
    %v75 = vlaneseq
    %v76 = vand.u32 %v75, 127
    %v77 = vadd.s32 %v76, 128
    %vm78 = vcmp.lt.s32.totalorder %v76, 0
    %v79 = vsub.s32 0, %v76
    %v80 = vsel %vm78, %v79, %v76
    %v81 = vshrl.u32 %v80, 4
    %v82 = vand.u32 %v80, 15
    %v83 = vsub.s32 0, %v82
    %v84 = vsel %vm78, %v83, %v82
    %vm85 = vcmp.lt.s32.totalorder %v77, 0
    %v86 = vsub.s32 0, %v77
    %v87 = vsel %vm85, %v86, %v77
    %v88 = vshrl.u32 %v87, 4
    %v89 = vand.u32 %v87, 15
    %v90 = vsub.s32 0, %v89
    %v91 = vsel %vm85, %v90, %v89
    %vm92 = vcmp.ne.s32.totalorder %v84, 0
    %vm93 = vcmp.ne.s32.totalorder %v91, 0
    %vm94 = vcmp.lt.s32.totalorder %v84, 0
    %vm95 = vcmp.lt.s32.totalorder %v91, 0
    %vm96 = vmand %vm94, %vm92
    %vm97 = vmand %vm95, %vm93
    %v98 = vadd.s32 %v84, 16
    %v99 = vadd.s32 %v91, 16
    %v100 = vsel %vm96, %v98, %v84
    %v101 = vsel %vm97, %v99, %v91
    %103 = vset.pattern.permute.xlu0 3
    %104 = vperm.xlu0 %103, %v74
    %v105 = vpop.permute.xlu0 %104
    %v107 = vmul.f32 %v105, %v71
    %v108 = vmul.f32 %v105, %v72
    %v109 = vmul.f32 %v105, %v73
    %113 = vrot.lane.b32.xlu0 %v71, 80
    %v114 = vpop.permute.xlu0 %113
    %115 = vrot.lane.b32.xlu0 %v72, 80
    %v116 = vpop.permute.xlu0 %115
    %117 = vrot.lane.b32.xlu0 %v73, 80
    %v118 = vpop.permute.xlu0 %117
    %vm119 = vcmask 654336
    %v120 = vsel %vm119, %v114, %v116
    %v121 = vsel %vm119, %v116, %v118
    %124 = vrot.lane.b32.xlu0 %v120, 3
    %v125 = vpop.permute.xlu0 %124
    %126 = vrot.lane.b32.xlu0 %v121, 3
    %v127 = vpop.permute.xlu0 %126
    %vm128 = vcmp.lt.s32.totalorder %v76, 3
    %v129 = vsel %vm128, %v125, %v127
    %v130 = vsel %vm128, %v127, %v125
    %vm131 = vcmp.ge.s32.totalorder %v100, 3
    %vm132 = vcmp.ge.s32.totalorder %v101, 3
    %v133 = vsel %vm131, 1, 0
    %v134 = vsel %vm132, 1, 0
    %v135 = vcvt.s32.f32 %v133
    %v136 = vcvt.s32.f32 %v134
    %v137 = vmul.f32 %v130, %v135
    %v138 = vmul.f32 %v129, %v136
    %139 = vset.pattern.permute.xlu0 0
    %140 = vperm.xlu0 %139, %v74
    %v141 = vpop.permute.xlu0 %140
    %v143 = vmul.f32 %v141, %v137
    %v144 = vmul.f32 %v141, %v138
    %147 = vrot.lane.b32.xlu0 %v143, 48
    %v148 = vpop.permute.xlu0 %147
    %149 = vrot.lane.b32.xlu0 %v144, 48
    %v150 = vpop.permute.xlu0 %149
    %v151 = vsel %vm30, %v148, %v150
    %v155 = vadd.f32 %v107, %v148
    %v156 = vadd.f32 %v108, %v151
    %v157 = vadd.f32 %v109, %v150
    %158 = vrot.lane.b32.xlu0 %v120, 2
    %v159 = vpop.permute.xlu0 %158
    %160 = vrot.lane.b32.xlu0 %v121, 2
    %v161 = vpop.permute.xlu0 %160
    %vm162 = vcmp.lt.s32.totalorder %v76, 2
    %v163 = vsel %vm162, %v159, %v161
    %v164 = vsel %vm162, %v161, %v159
    %vm165 = vcmp.ge.s32.totalorder %v100, 2
    %vm166 = vcmp.ge.s32.totalorder %v101, 2
    %v167 = vsel %vm165, 1, 0
    %v168 = vsel %vm166, 1, 0
    %v169 = vcvt.s32.f32 %v167
    %v170 = vcvt.s32.f32 %v168
    %v171 = vmul.f32 %v164, %v169
    %v172 = vmul.f32 %v163, %v170
    %173 = vset.pattern.permute.xlu0 1
    %174 = vperm.xlu0 %173, %v74
    %v175 = vpop.permute.xlu0 %174
    %v177 = vmul.f32 %v175, %v171
    %v178 = vmul.f32 %v175, %v172
    %181 = vrot.lane.b32.xlu0 %v177, 48
    %v182 = vpop.permute.xlu0 %181
    %183 = vrot.lane.b32.xlu0 %v178, 48
    %v184 = vpop.permute.xlu0 %183
    %v185 = vsel %vm30, %v182, %v184
    %v189 = vadd.f32 %v155, %v182
    %v190 = vadd.f32 %v156, %v185
    %v191 = vadd.f32 %v157, %v184
    %192 = vrot.lane.b32.xlu0 %v120, 1
    %v193 = vpop.permute.xlu0 %192
    %194 = vrot.lane.b32.xlu0 %v121, 1
    %v195 = vpop.permute.xlu0 %194
    %vm196 = vcmp.lt.s32.totalorder %v76, 1
    %v197 = vsel %vm196, %v193, %v195
    %v198 = vsel %vm196, %v195, %v193
    %vm199 = vcmp.ge.s32.totalorder %v100, 1
    %vm200 = vcmp.ge.s32.totalorder %v101, 1
    %v201 = vsel %vm199, 1, 0
    %v202 = vsel %vm200, 1, 0
    %v203 = vcvt.s32.f32 %v201
    %v204 = vcvt.s32.f32 %v202
    %v205 = vmul.f32 %v198, %v203
    %v206 = vmul.f32 %v197, %v204
    %207 = vset.pattern.permute.xlu0 2
    %208 = vperm.xlu0 %207, %v74
    %v209 = vpop.permute.xlu0 %208
    %v211 = vmul.f32 %v209, %v205
    %v212 = vmul.f32 %v209, %v206
    %215 = vrot.lane.b32.xlu0 %v211, 48
    %v216 = vpop.permute.xlu0 %215
    %217 = vrot.lane.b32.xlu0 %v212, 48
    %v218 = vpop.permute.xlu0 %217
    %v219 = vsel %vm30, %v216, %v218
    %v223 = vadd.f32 %v189, %v216
    %v224 = vadd.f32 %v190, %v219
    %v225 = vadd.f32 %v191, %v218
    %226 = vrot.lane.b32.xlu0 %v120, 127
    %v227 = vpop.permute.xlu0 %226
    %228 = vrot.lane.b32.xlu0 %v121, 127
    %v229 = vpop.permute.xlu0 %228
    %vm230 = vcmp.lt.s32.totalorder %v76, 127
    %v231 = vsel %vm230, %v227, %v229
    %v232 = vsel %vm230, %v229, %v227
    %vm233 = vcmp.lt.s32.totalorder %v100, 15
    %vm234 = vcmp.lt.s32.totalorder %v101, 15
    %v235 = vsel %vm233, 1, 0
    %v236 = vsel %vm234, 1, 0
    %v237 = vcvt.s32.f32 %v235
    %v238 = vcvt.s32.f32 %v236
    %v239 = vmul.f32 %v231, %v237
    %v240 = vmul.f32 %v232, %v238
    %241 = vset.pattern.permute.xlu0 4
    %242 = vperm.xlu0 %241, %v74
    %v243 = vpop.permute.xlu0 %242
    %v245 = vmul.f32 %v243, %v239
    %v246 = vmul.f32 %v243, %v240
    %249 = vrot.lane.b32.xlu0 %v245, 48
    %v250 = vpop.permute.xlu0 %249
    %251 = vrot.lane.b32.xlu0 %v246, 48
    %v252 = vpop.permute.xlu0 %251
    %v253 = vsel %vm30, %v250, %v252
    %v257 = vadd.f32 %v223, %v250
    %v258 = vadd.f32 %v224, %v253
    %v259 = vadd.f32 %v225, %v252
    %260 = vrot.lane.b32.xlu0 %v120, 126
    %v261 = vpop.permute.xlu0 %260
    %262 = vrot.lane.b32.xlu0 %v121, 126
    %v263 = vpop.permute.xlu0 %262
    %vm264 = vcmp.lt.s32.totalorder %v76, 126
    %v265 = vsel %vm264, %v261, %v263
    %v266 = vsel %vm264, %v263, %v261
    %vm267 = vcmp.lt.s32.totalorder %v100, 14
    %vm268 = vcmp.lt.s32.totalorder %v101, 14
    %v269 = vsel %vm267, 1, 0
    %v270 = vsel %vm268, 1, 0
    %v271 = vcvt.s32.f32 %v269
    %v272 = vcvt.s32.f32 %v270
    %v273 = vmul.f32 %v265, %v271
    %v274 = vmul.f32 %v266, %v272
    %275 = vset.pattern.permute.xlu0 5
    %276 = vperm.xlu0 %275, %v74
    %v277 = vpop.permute.xlu0 %276
    %v279 = vmul.f32 %v277, %v273
    %v280 = vmul.f32 %v277, %v274
    %283 = vrot.lane.b32.xlu0 %v279, 48
    %v284 = vpop.permute.xlu0 %283
    %285 = vrot.lane.b32.xlu0 %v280, 48
    %v286 = vpop.permute.xlu0 %285
    %v287 = vsel %vm30, %v284, %v286
    %v291 = vadd.f32 %v257, %v284
    %v292 = vadd.f32 %v258, %v287
    %v293 = vadd.f32 %v259, %v286
    %294 = vrot.lane.b32.xlu0 %v120, 125
    %v295 = vpop.permute.xlu0 %294
    %296 = vrot.lane.b32.xlu0 %v121, 125
    %v297 = vpop.permute.xlu0 %296
    %vm298 = vcmp.lt.s32.totalorder %v76, 125
    %v299 = vsel %vm298, %v295, %v297
    %v300 = vsel %vm298, %v297, %v295
    %vm301 = vcmp.lt.s32.totalorder %v100, 13
    %vm302 = vcmp.lt.s32.totalorder %v101, 13
    %v303 = vsel %vm301, 1, 0
    %v304 = vsel %vm302, 1, 0
    %v305 = vcvt.s32.f32 %v303
    %v306 = vcvt.s32.f32 %v304
    %v307 = vmul.f32 %v299, %v305
    %v308 = vmul.f32 %v300, %v306
    %309 = vset.pattern.permute.xlu0 6
    %310 = vperm.xlu0 %309, %v74
    %v311 = vpop.permute.xlu0 %310
    %v313 = vmul.f32 %v311, %v307
    %v314 = vmul.f32 %v311, %v308
    %317 = vrot.lane.b32.xlu0 %v313, 48
    %v318 = vpop.permute.xlu0 %317
    %319 = vrot.lane.b32.xlu0 %v314, 48
    %v320 = vpop.permute.xlu0 %319
    %v321 = vsel %vm30, %v318, %v320
    %v325 = vadd.f32 %v291, %v318
    %v326 = vadd.f32 %v292, %v321
    %v327 = vadd.f32 %v293, %v320
    %v328 = vld [vmem:[%s2] sm:$0xff]
    %330 = vset.pattern.permute.xlu0 0
    %331 = vperm.xlu0 %330, %v328
    %v332 = vpop.permute.xlu0 %331
    %v334 = vadd.f32 %v325, %v332
    %v335 = vadd.f32 %v326, %v332
    %v336 = vadd.f32 %v327, %v332
    %vm337 = vcmask 1047936
    %338 = vst.msk [vmem:[#allocation2] sm:$0xff] %vm337, %v334
    %339 = vst [vmem:[#allocation2 + $0x8] sm:$0xff] %v335
    %340 = vst.msk [vmem:[#allocation2 + $0x10] sm:$0xff] %vm30, %v336
    %v341 = vld [vmem:[%s3] sm:$0xff]
    %343 = vset.pattern.permute.xlu0 3
    %344 = vperm.xlu0 %343, %v341
    %v345 = vpop.permute.xlu0 %344
    %v347 = vmul.f32 %v345, %v334
    %v348 = vmul.f32 %v345, %v335
    %v349 = vmul.f32 %v345, %v336
    %v350 = vld [vmem:[#allocation2] sm:$0xff]
    %v351 = vld [vmem:[#allocation2 + $0x8] sm:$0xff]
    %352 = vset.pattern.permute.xlu0 0
    %353 = vperm.xlu0 %352, %v341
    %v354 = vpop.permute.xlu0 %353
    %v356 = vmul.f32 %v354, %v350
    %v357 = vmul.f32 %v354, %v351
    %360 = vrot.lane.b32.xlu0 %v356, 48
    %v361 = vpop.permute.xlu0 %360
    %362 = vrot.lane.b32.xlu0 %v357, 48
    %v363 = vpop.permute.xlu0 %362
    %v364 = vsel %vm30, %v361, %v363
    %v368 = vadd.f32 %v347, %v361
    %v369 = vadd.f32 %v348, %v364
    %v370 = vadd.f32 %v349, %v363
    %v371 = vld [vmem:[#allocation2] sm:$0xff]
    %v372 = vld [vmem:[#allocation2 + $0x8] sm:$0xff]
    %v373 = vld [vmem:[#allocation2 + $0x10] sm:$0xff]
    %374 = vset.pattern.permute.xlu0 1
    %375 = vperm.xlu0 %374, %v341
    %v376 = vpop.permute.xlu0 %375
    %v378 = vmul.f32 %v376, %v371
    %v379 = vmul.f32 %v376, %v372
    %v380 = vmul.f32 %v376, %v373
    %384 = vrot.lane.b32.xlu0 %v378, 32
    %v385 = vpop.permute.xlu0 %384
    %386 = vrot.lane.b32.xlu0 %v379, 32
    %v387 = vpop.permute.xlu0 %386
    %388 = vrot.lane.b32.xlu0 %v380, 32
    %v389 = vpop.permute.xlu0 %388
    %vm390 = vcmask 261120
    %v391 = vsel %vm390, %v385, %v387
    %v392 = vsel %vm390, %v387, %v389
    %v396 = vadd.f32 %v368, %v385
    %v397 = vadd.f32 %v369, %v391
    %v398 = vadd.f32 %v370, %v392
    %399 = vset.pattern.permute.xlu0 2
    %400 = vperm.xlu0 %399, %v341
    %v401 = vpop.permute.xlu0 %400
    %v403 = vmul.f32 %v401, %v371
    %v404 = vmul.f32 %v401, %v372
    %v405 = vmul.f32 %v401, %v373
    %409 = vrot.lane.b32.xlu0 %v403, 16
    %v410 = vpop.permute.xlu0 %409
    %411 = vrot.lane.b32.xlu0 %v404, 16
    %v412 = vpop.permute.xlu0 %411
    %413 = vrot.lane.b32.xlu0 %v405, 16
    %v414 = vpop.permute.xlu0 %413
    %vm415 = vcmask 130048
    %v416 = vsel %vm415, %v410, %v412
    %v417 = vsel %vm415, %v412, %v414
    %v421 = vadd.f32 %v396, %v410
    %v422 = vadd.f32 %v397, %v416
    %v423 = vadd.f32 %v398, %v417
    %424 = vset.pattern.permute.xlu0 4
    %425 = vperm.xlu0 %424, %v341
    %v426 = vpop.permute.xlu0 %425
    %v428 = vmul.f32 %v426, %v371
    %v429 = vmul.f32 %v426, %v372
    %v430 = vmul.f32 %v426, %v373
    %434 = vrot.lane.b32.xlu0 %v428, 112
    %v435 = vpop.permute.xlu0 %434
    %436 = vrot.lane.b32.xlu0 %v429, 112
    %v437 = vpop.permute.xlu0 %436
    %438 = vrot.lane.b32.xlu0 %v430, 112
    %v439 = vpop.permute.xlu0 %438
    %vm440 = vcmask 916480
    %v441 = vsel %vm440, %v435, %v437
    %v442 = vsel %vm440, %v437, %v439
    %v446 = vadd.f32 %v421, %v441
    %v447 = vadd.f32 %v422, %v442
    %v448 = vadd.f32 %v423, %v439
    %449 = vset.pattern.permute.xlu0 5
    %450 = vperm.xlu0 %449, %v341
    %v451 = vpop.permute.xlu0 %450
    %v453 = vmul.f32 %v451, %v371
    %v454 = vmul.f32 %v451, %v372
    %v455 = vmul.f32 %v451, %v373
    %459 = vrot.lane.b32.xlu0 %v453, 96
    %v460 = vpop.permute.xlu0 %459
    %461 = vrot.lane.b32.xlu0 %v454, 96
    %v462 = vpop.permute.xlu0 %461
    %463 = vrot.lane.b32.xlu0 %v455, 96
    %v464 = vpop.permute.xlu0 %463
    %vm465 = vcmask 785408
    %v466 = vsel %vm465, %v460, %v462
    %v467 = vsel %vm465, %v462, %v464
    %v471 = vadd.f32 %v446, %v466
    %v472 = vadd.f32 %v447, %v467
    %v473 = vadd.f32 %v448, %v464
    %474 = vset.pattern.permute.xlu0 6
    %475 = vperm.xlu0 %474, %v341
    %v476 = vpop.permute.xlu0 %475
    %v478 = vmul.f32 %v476, %v371
    %v479 = vmul.f32 %v476, %v372
    %v480 = vmul.f32 %v476, %v373
    %484 = vrot.lane.b32.xlu0 %v478, 80
    %v485 = vpop.permute.xlu0 %484
    %486 = vrot.lane.b32.xlu0 %v479, 80
    %v487 = vpop.permute.xlu0 %486
    %488 = vrot.lane.b32.xlu0 %v480, 80
    %v489 = vpop.permute.xlu0 %488
    %v490 = vsel %vm119, %v485, %v487
    %v491 = vsel %vm119, %v487, %v489
    %v495 = vadd.f32 %v471, %v490
    %v496 = vadd.f32 %v472, %v491
    %v497 = vadd.f32 %v473, %v489
    %v498 = vld [vmem:[%s4] sm:$0xff]
    %500 = vset.pattern.permute.xlu0 0
    %501 = vperm.xlu0 %500, %v498
    %v502 = vpop.permute.xlu0 %501
    %v504 = vadd.f32 %v495, %v502
    %v505 = vadd.f32 %v496, %v502
    %v506 = vadd.f32 %v497, %v502
    %v507 = vld [vmem:[%s5] sm:$0xff]
    %v508 = vld [vmem:[%s6] sm:$0xff]
    %v509 = vld [vmem:[%s7] sm:$0xff]
    %v510 = vld [vmem:[%s0] sm:$0xf0]
    %v511 = vld [vmem:[%s0 + $0x8] sm:$0xf0]
    %v514 = vrot.slane %v510, 4
    %v515 = vrot.slane %v511, 4
    %vm516 = vcmask 31744
    %v518 = vsel %vm516, %v508, 0
    %vm520 = vcmask 1043456
    %v521 = vsel %vm520, %v514, 0
    %v523 = vsel %vm520, %v515, 0
    %525 = vmatprep.subr.mxu0 %v523
    %526 = vmatpush1.msra.mxu0 %v521
    %527 = vmatprep.subr.mxu0 0.0
    %528 = vmatpush1.msra.mxu0 0.0
    %529 = vmatprep.subr.mxu0 0.0
    %530 = vmatpush1.msra.mxu0 0.0
    %531 = vmatprep.subr.mxu0 0.0
    %532 = vmatpush1.msra.mxu0 0.0
    %533 = vmatprep.subr.mxu0 0.0
    %534 = vmatpush1.msra.mxu0 0.0
    %535 = vmatprep.subr.mxu0 0.0
    %536 = vmatpush1.msra.mxu0 0.0
    %537 = vmatprep.subr.mxu0 0.0
    %538 = vmatpush1.msra.mxu0 0.0
    %539 = vmatprep.subr.mxu0 0.0
    %540 = vmatpush1.msra.mxu0 0.0
    %541 = vmatprep.subr.mxu0 0.0
    %542 = vmatpush1.msra.mxu0 0.0
    %543 = vmatprep.subr.mxu0 0.0
    %544 = vmatpush1.msra.mxu0 0.0
    %545 = vmatprep.subr.mxu0 0.0
    %546 = vmatpush1.msra.mxu0 0.0
    %547 = vmatprep.subr.mxu0 0.0
    %548 = vmatpush1.msra.mxu0 0.0
    %549 = vmatprep.subr.mxu0 0.0
    %550 = vmatpush1.msra.mxu0 0.0
    %551 = vmatprep.subr.mxu0 0.0
    %552 = vmatpush1.msra.mxu0 0.0
    %553 = vmatprep.subr.mxu0 0.0
    %554 = vmatpush1.msra.mxu0 0.0
    %555 = vmatprep.subr.mxu0 0.0
    %556 = vmatpush1.msra.mxu0 0.0
    %557 = vmatprep.subr.mxu0 0.0
    %558 = vmatpush1.msra.mxu0 0.0
    %559 = vmatprep.subr.mxu0 0.0
    %560 = vmatpush1.msra.mxu0 0.0
    %561 = vmatprep.subr.mxu0 0.0
    %562 = vmatpush1.msra.mxu0 0.0
    %563 = vmatprep.subr.mxu0 0.0
    %564 = vmatpush1.msra.mxu0 0.0
    %565 = vmatprep.subr.mxu0 0.0
    %566 = vmatpush1.msra.mxu0 0.0
    %567 = vmatprep.subr.mxu0 0.0
    %568 = vmatpush1.msra.mxu0 0.0
    %569 = vmatprep.subr.mxu0 0.0
    %570 = vmatpush1.msra.mxu0 0.0
    %571 = vmatprep.subr.mxu0 0.0
    %572 = vmatpush1.msra.mxu0 0.0
    %573 = vmatprep.subr.mxu0 0.0
    %574 = vmatpush1.msra.mxu0 0.0
    %575 = vmatprep.subr.mxu0 0.0
    %576 = vmatpush1.msra.mxu0 0.0
    %577 = vmatprep.subr.mxu0 0.0
    %578 = vmatpush1.msra.mxu0 0.0
    %579 = vmatprep.subr.mxu0 0.0
    %580 = vmatpush1.msra.mxu0 0.0
    %581 = vmatprep.subr.mxu0 0.0
    %582 = vmatpush1.msra.mxu0 0.0
    %583 = vmatprep.subr.mxu0 0.0
    %584 = vmatpush1.msra.mxu0 0.0
    %585 = vmatprep.subr.mxu0 0.0
    %586 = vmatpush1.msra.mxu0 0.0
    %587 = vmatprep.subr.mxu0 0.0
    %588 = vmatpush1.msra.mxu0 0.0
    %589 = vmatprep.mubr.f32.mxu0 0.0
    %590 = vmatmul.mubr.f32.gmra.mrb[0].mxu0 %v518
    %v591 = vpop.f32.mrb[0].mxu0
    %v592 = vadd.f32 0.0, %v591
    %v593 = vpop.f32.mrb[0].mxu0
    %v594 = vadd.f32 0.0, %v593
    %595 = vdwg.mxu0
    %599 = vrot.lane.b32.xlu0 %v504, 80
    %v600 = vpop.permute.xlu0 %599
    %601 = vrot.lane.b32.xlu0 %v505, 80
    %v602 = vpop.permute.xlu0 %601
    %603 = vrot.lane.b32.xlu0 %v506, 80
    %v604 = vpop.permute.xlu0 %603
    %v605 = vsel %vm119, %v600, %v602
    %v606 = vsel %vm119, %v602, %v604
    %v608 = vsel %vm516, %v507, 0
    %v610 = vsel %vm520, %v605, 0
    %v612 = vsel %vm520, %v606, 0
    %614 = vmatprep.subr.mxu0 %v612
    %615 = vmatpush1.msra.mxu0 %v610
    %616 = vmatprep.subr.mxu0 0.0
    %617 = vmatpush1.msra.mxu0 0.0
    %618 = vmatprep.subr.mxu0 0.0
    %619 = vmatpush1.msra.mxu0 0.0
    %620 = vmatprep.subr.mxu0 0.0
    %621 = vmatpush1.msra.mxu0 0.0
    %622 = vmatprep.subr.mxu0 0.0
    %623 = vmatpush1.msra.mxu0 0.0
    %624 = vmatprep.subr.mxu0 0.0
    %625 = vmatpush1.msra.mxu0 0.0
    %626 = vmatprep.subr.mxu0 0.0
    %627 = vmatpush1.msra.mxu0 0.0
    %628 = vmatprep.subr.mxu0 0.0
    %629 = vmatpush1.msra.mxu0 0.0
    %630 = vmatprep.subr.mxu0 0.0
    %631 = vmatpush1.msra.mxu0 0.0
    %632 = vmatprep.subr.mxu0 0.0
    %633 = vmatpush1.msra.mxu0 0.0
    %634 = vmatprep.subr.mxu0 0.0
    %635 = vmatpush1.msra.mxu0 0.0
    %636 = vmatprep.subr.mxu0 0.0
    %637 = vmatpush1.msra.mxu0 0.0
    %638 = vmatprep.subr.mxu0 0.0
    %639 = vmatpush1.msra.mxu0 0.0
    %640 = vmatprep.subr.mxu0 0.0
    %641 = vmatpush1.msra.mxu0 0.0
    %642 = vmatprep.subr.mxu0 0.0
    %643 = vmatpush1.msra.mxu0 0.0
    %644 = vmatprep.subr.mxu0 0.0
    %645 = vmatpush1.msra.mxu0 0.0
    %646 = vmatprep.subr.mxu0 0.0
    %647 = vmatpush1.msra.mxu0 0.0
    %648 = vmatprep.subr.mxu0 0.0
    %649 = vmatpush1.msra.mxu0 0.0
    %650 = vmatprep.subr.mxu0 0.0
    %651 = vmatpush1.msra.mxu0 0.0
    %652 = vmatprep.subr.mxu0 0.0
    %653 = vmatpush1.msra.mxu0 0.0
    %654 = vmatprep.subr.mxu0 0.0
    %655 = vmatpush1.msra.mxu0 0.0
    %656 = vmatprep.subr.mxu0 0.0
    %657 = vmatpush1.msra.mxu0 0.0
    %658 = vmatprep.subr.mxu0 0.0
    %659 = vmatpush1.msra.mxu0 0.0
    %660 = vmatprep.subr.mxu0 0.0
    %661 = vmatpush1.msra.mxu0 0.0
    %662 = vmatprep.subr.mxu0 0.0
    %663 = vmatpush1.msra.mxu0 0.0
    %664 = vmatprep.subr.mxu0 0.0
    %665 = vmatpush1.msra.mxu0 0.0
    %666 = vmatprep.subr.mxu0 0.0
    %667 = vmatpush1.msra.mxu0 0.0
    %668 = vmatprep.subr.mxu0 0.0
    %669 = vmatpush1.msra.mxu0 0.0
    %670 = vmatprep.subr.mxu0 0.0
    %671 = vmatpush1.msra.mxu0 0.0
    %672 = vmatprep.subr.mxu0 0.0
    %673 = vmatpush1.msra.mxu0 0.0
    %674 = vmatprep.subr.mxu0 0.0
    %675 = vmatpush1.msra.mxu0 0.0
    %676 = vmatprep.subr.mxu0 0.0
    %677 = vmatpush1.msra.mxu0 0.0
    %678 = vmatprep.mubr.f32.mxu0 0.0
    %679 = vmatmul.mubr.f32.gmra.mrb[0].mxu0 %v608
    %v680 = vpop.f32.mrb[0].mxu0
    %v681 = vadd.f32 %v592, %v680
    %v682 = vpop.f32.mrb[0].mxu0
    %v683 = vadd.f32 %v594, %v682
    %684 = vdwg.mxu0
    %686 = vset.pattern.permute.xlu0 0
    %687 = vperm.xlu0 %686, %v509
    %v688 = vpop.permute.xlu0 %687
    %v690 = vadd.f32 %v681, %v688
    %v691 = vadd.f32 %v683, %v688
    %v692 = vmul.f32 %v690, 0.5
    %v693 = vmul.f32 %v691, 0.5
    %v694 = vmul.f32 %v690, 0.70710677
    %v695 = vmul.f32 %v691, 0.70710677
    %vm696 = vcmp.ge.f32.partialorder %v694, 0.0
    %vm697 = vcmp.ge.f32.partialorder %v695, 0.0
    %v698 = vsel %vm696, 1.0, -1.0
    %v699 = vsel %vm697, 1.0, -1.0
    %v700 = vand.u32 2147483647, %v694
    %v701 = vand.u32 2147483647, %v695
    %v702 = vmul.f32 %v700, 0.3275911
    %v703 = vmul.f32 %v701, 0.3275911
    %v704 = vadd.f32 %v702, 1.0
    %v705 = vadd.f32 %v703, 1.0
    %v706 = vrcp.pop %v704
    %v707 = vmul.f32 1.0, %v706
    %v708 = vrcp.pop %v705
    %v709 = vmul.f32 1.0, %v708
    %v710 = vmul.f32 %v707, 1.0614054
    %v711 = vmul.f32 %v709, 1.0614054
    %v712 = vadd.f32 %v710, -1.4531521
    %v713 = vadd.f32 %v711, -1.4531521
    %v714 = vmul.f32 %v712, %v707
    %v715 = vmul.f32 %v713, %v709
    %v716 = vadd.f32 %v714, 1.4214138
    %v717 = vadd.f32 %v715, 1.4214138
    %v718 = vmul.f32 %v716, %v707
    %v719 = vmul.f32 %v717, %v709
    %v720 = vadd.f32 %v718, -0.28449672
    %v721 = vadd.f32 %v719, -0.28449672
    %v722 = vmul.f32 %v720, %v707
    %v723 = vmul.f32 %v721, %v709
    %v724 = vadd.f32 %v722, 0.2548296
    %v725 = vadd.f32 %v723, 0.2548296
    %v726 = vmul.f32 %v724, %v707
    %v727 = vmul.f32 %v725, %v709
    %v728 = vsub.f32 0.0, %v700
    %v729 = vsub.f32 0.0, %v701
    %v730 = vmul.f32 %v728, %v700
    %v731 = vmul.f32 %v729, %v701
    %v732 = vmul.f32 %v730, 1.442695
    %v733 = vpow.pop %v732
    %v734 = vmul.f32 %v731, 1.442695
    %v735 = vpow.pop %v734
    %v736 = vmul.f32 %v726, %v733
    %v737 = vmul.f32 %v727, %v735
    %v738 = vsub.f32 1.0, %v736
    %v739 = vsub.f32 1.0, %v737
    %v740 = vmul.f32 %v698, %v738
    %v741 = vmul.f32 %v699, %v739
    %v742 = vadd.f32 %v740, 1.0
    %v743 = vadd.f32 %v741, 1.0
    %v744 = vmul.f32 %v692, %v742
    %v745 = vmul.f32 %v693, %v743
    %746 = vst [vmem:[#allocation3] sm:$0xff] %v744
    %747 = vst [vmem:[#allocation3 + $0x8] sm:$0xff] %v745
    %v748 = vld [vmem:[%s51] sm:$0xf0]
    %v749 = vld [vmem:[%s51 + $0x8] sm:$0xf0]
    %v752 = vrot.slane %v748, 4
    %v753 = vrot.slane %v749, 4
    %v754 = vsel %vm520, %v752, 0
    %v756 = vsel %vm520, %v753, 0
    %758 = vmatprep.subr.mxu0 %v756
    %759 = vmatpush1.msra.mxu0 %v754
    %760 = vmatprep.subr.mxu0 0.0
    %761 = vmatpush1.msra.mxu0 0.0
    %762 = vmatprep.subr.mxu0 0.0
    %763 = vmatpush1.msra.mxu0 0.0
    %764 = vmatprep.subr.mxu0 0.0
    %765 = vmatpush1.msra.mxu0 0.0
    %766 = vmatprep.subr.mxu0 0.0
    %767 = vmatpush1.msra.mxu0 0.0
    %768 = vmatprep.subr.mxu0 0.0
    %769 = vmatpush1.msra.mxu0 0.0
    %770 = vmatprep.subr.mxu0 0.0
    %771 = vmatpush1.msra.mxu0 0.0
    %772 = vmatprep.subr.mxu0 0.0
    %773 = vmatpush1.msra.mxu0 0.0
    %774 = vmatprep.subr.mxu0 0.0
    %775 = vmatpush1.msra.mxu0 0.0
    %776 = vmatprep.subr.mxu0 0.0
    %777 = vmatpush1.msra.mxu0 0.0
    %778 = vmatprep.subr.mxu0 0.0
    %779 = vmatpush1.msra.mxu0 0.0
    %780 = vmatprep.subr.mxu0 0.0
    %781 = vmatpush1.msra.mxu0 0.0
    %782 = vmatprep.subr.mxu0 0.0
    %783 = vmatpush1.msra.mxu0 0.0
    %784 = vmatprep.subr.mxu0 0.0
    %785 = vmatpush1.msra.mxu0 0.0
    %786 = vmatprep.subr.mxu0 0.0
    %787 = vmatpush1.msra.mxu0 0.0
    %788 = vmatprep.subr.mxu0 0.0
    %789 = vmatpush1.msra.mxu0 0.0
    %790 = vmatprep.subr.mxu0 0.0
    %791 = vmatpush1.msra.mxu0 0.0
    %792 = vmatprep.subr.mxu0 0.0
    %793 = vmatpush1.msra.mxu0 0.0
    %794 = vmatprep.subr.mxu0 0.0
    %795 = vmatpush1.msra.mxu0 0.0
    %796 = vmatprep.subr.mxu0 0.0
    %797 = vmatpush1.msra.mxu0 0.0
    %798 = vmatprep.subr.mxu0 0.0
    %799 = vmatpush1.msra.mxu0 0.0
    %800 = vmatprep.subr.mxu0 0.0
    %801 = vmatpush1.msra.mxu0 0.0
    %802 = vmatprep.subr.mxu0 0.0
    %803 = vmatpush1.msra.mxu0 0.0
    %804 = vmatprep.subr.mxu0 0.0
    %805 = vmatpush1.msra.mxu0 0.0
    %806 = vmatprep.subr.mxu0 0.0
    %807 = vmatpush1.msra.mxu0 0.0
    %808 = vmatprep.subr.mxu0 0.0
    %809 = vmatpush1.msra.mxu0 0.0
    %810 = vmatprep.subr.mxu0 0.0
    %811 = vmatpush1.msra.mxu0 0.0
    %812 = vmatprep.subr.mxu0 0.0
    %813 = vmatpush1.msra.mxu0 0.0
    %814 = vmatprep.subr.mxu0 0.0
    %815 = vmatpush1.msra.mxu0 0.0
    %816 = vmatprep.subr.mxu0 0.0
    %817 = vmatpush1.msra.mxu0 0.0
    %818 = vmatprep.subr.mxu0 0.0
    %819 = vmatpush1.msra.mxu0 0.0
    %820 = vmatprep.subr.mxu0 0.0
    %821 = vmatpush1.msra.mxu0 0.0
    %822 = vmatprep.mubr.f32.mxu0 0.0
    %823 = vmatmul.mubr.f32.gmra.mrb[0].mxu0 %v518
    %v824 = vpop.f32.mrb[0].mxu0
    %v825 = vadd.f32 0.0, %v824
    %v826 = vpop.f32.mrb[0].mxu0
    %v827 = vadd.f32 0.0, %v826
    %828 = vdwg.mxu0
    %v829 = vrot.slane %v504, 4
    %v830 = vrot.slane %v505, 4
    %v831 = vrot.slane %v506, 4
    %832 = vrot.lane.b32.xlu0 %v829, 80
    %v833 = vpop.permute.xlu0 %832
    %834 = vrot.lane.b32.xlu0 %v830, 80
    %v835 = vpop.permute.xlu0 %834
    %836 = vrot.lane.b32.xlu0 %v831, 80
    %v837 = vpop.permute.xlu0 %836
    %v838 = vsel %vm119, %v833, %v835
    %v839 = vsel %vm119, %v835, %v837
    %v840 = vsel %vm520, %v838, 0
    %v842 = vsel %vm520, %v839, 0
    %844 = vmatprep.subr.mxu0 %v842
    %845 = vmatpush1.msra.mxu0 %v840
    %846 = vmatprep.subr.mxu0 0.0
    %847 = vmatpush1.msra.mxu0 0.0
    %848 = vmatprep.subr.mxu0 0.0
    %849 = vmatpush1.msra.mxu0 0.0
    %850 = vmatprep.subr.mxu0 0.0
    %851 = vmatpush1.msra.mxu0 0.0
    %852 = vmatprep.subr.mxu0 0.0
    %853 = vmatpush1.msra.mxu0 0.0
    %854 = vmatprep.subr.mxu0 0.0
    %855 = vmatpush1.msra.mxu0 0.0
    %856 = vmatprep.subr.mxu0 0.0
    %857 = vmatpush1.msra.mxu0 0.0
    %858 = vmatprep.subr.mxu0 0.0
    %859 = vmatpush1.msra.mxu0 0.0
    %860 = vmatprep.subr.mxu0 0.0
    %861 = vmatpush1.msra.mxu0 0.0
    %862 = vmatprep.subr.mxu0 0.0
    %863 = vmatpush1.msra.mxu0 0.0
    %864 = vmatprep.subr.mxu0 0.0
    %865 = vmatpush1.msra.mxu0 0.0
    %866 = vmatprep.subr.mxu0 0.0
    %867 = vmatpush1.msra.mxu0 0.0
    %868 = vmatprep.subr.mxu0 0.0
    %869 = vmatpush1.msra.mxu0 0.0
    %870 = vmatprep.subr.mxu0 0.0
    %871 = vmatpush1.msra.mxu0 0.0
    %872 = vmatprep.subr.mxu0 0.0
    %873 = vmatpush1.msra.mxu0 0.0
    %874 = vmatprep.subr.mxu0 0.0
    %875 = vmatpush1.msra.mxu0 0.0
    %876 = vmatprep.subr.mxu0 0.0
    %877 = vmatpush1.msra.mxu0 0.0
    %878 = vmatprep.subr.mxu0 0.0
    %879 = vmatpush1.msra.mxu0 0.0
    %880 = vmatprep.subr.mxu0 0.0
    %881 = vmatpush1.msra.mxu0 0.0
    %882 = vmatprep.subr.mxu0 0.0
    %883 = vmatpush1.msra.mxu0 0.0
    %884 = vmatprep.subr.mxu0 0.0
    %885 = vmatpush1.msra.mxu0 0.0
    %886 = vmatprep.subr.mxu0 0.0
    %887 = vmatpush1.msra.mxu0 0.0
    %888 = vmatprep.subr.mxu0 0.0
    %889 = vmatpush1.msra.mxu0 0.0
    %890 = vmatprep.subr.mxu0 0.0
    %891 = vmatpush1.msra.mxu0 0.0
    %892 = vmatprep.subr.mxu0 0.0
    %893 = vmatpush1.msra.mxu0 0.0
    %894 = vmatprep.subr.mxu0 0.0
    %895 = vmatpush1.msra.mxu0 0.0
    %896 = vmatprep.subr.mxu0 0.0
    %897 = vmatpush1.msra.mxu0 0.0
    %898 = vmatprep.subr.mxu0 0.0
    %899 = vmatpush1.msra.mxu0 0.0
    %900 = vmatprep.subr.mxu0 0.0
    %901 = vmatpush1.msra.mxu0 0.0
    %902 = vmatprep.subr.mxu0 0.0
    %903 = vmatpush1.msra.mxu0 0.0
    %904 = vmatprep.subr.mxu0 0.0
    %905 = vmatpush1.msra.mxu0 0.0
    %906 = vmatprep.subr.mxu0 0.0
    %907 = vmatpush1.msra.mxu0 0.0
    %908 = vmatprep.mubr.f32.mxu0 0.0
    %909 = vmatmul.mubr.f32.gmra.mrb[0].mxu0 %v608
    %v910 = vpop.f32.mrb[0].mxu0
    %v911 = vadd.f32 %v825, %v910
    %v912 = vpop.f32.mrb[0].mxu0
    %v913 = vadd.f32 %v827, %v912
    %914 = vdwg.mxu0
    %v915 = vadd.f32 %v911, %v688
    %v916 = vadd.f32 %v913, %v688
    %v917 = vmul.f32 %v915, 0.5
    %v918 = vmul.f32 %v916, 0.5
    %v919 = vmul.f32 %v915, 0.70710677
    %v920 = vmul.f32 %v916, 0.70710677
    %vm921 = vcmp.ge.f32.partialorder %v919, 0.0
    %vm922 = vcmp.ge.f32.partialorder %v920, 0.0
    %v923 = vsel %vm921, 1.0, -1.0
    %v924 = vsel %vm922, 1.0, -1.0
    %v925 = vand.u32 2147483647, %v919
    %v926 = vand.u32 2147483647, %v920
    %v927 = vmul.f32 %v925, 0.3275911
    %v928 = vmul.f32 %v926, 0.3275911
    %v929 = vadd.f32 %v927, 1.0
    %v930 = vadd.f32 %v928, 1.0
    %v931 = vrcp.pop %v929
    %v932 = vmul.f32 1.0, %v931
    %v933 = vrcp.pop %v930
    %v934 = vmul.f32 1.0, %v933
    %v935 = vmul.f32 %v932, 1.0614054
    %v936 = vmul.f32 %v934, 1.0614054
    %v937 = vadd.f32 %v935, -1.4531521
    %v938 = vadd.f32 %v936, -1.4531521
    %v939 = vmul.f32 %v937, %v932
    %v940 = vmul.f32 %v938, %v934
    %v941 = vadd.f32 %v939, 1.4214138
    %v942 = vadd.f32 %v940, 1.4214138
    %v943 = vmul.f32 %v941, %v932
    %v944 = vmul.f32 %v942, %v934
    %v945 = vadd.f32 %v943, -0.28449672
    %v946 = vadd.f32 %v944, -0.28449672
    %v947 = vmul.f32 %v945, %v932
    %v948 = vmul.f32 %v946, %v934
    %v949 = vadd.f32 %v947, 0.2548296
    %v950 = vadd.f32 %v948, 0.2548296
    %v951 = vmul.f32 %v949, %v932
    %v952 = vmul.f32 %v950, %v934
    %v953 = vsub.f32 0.0, %v925
    %v954 = vsub.f32 0.0, %v926
    %v955 = vmul.f32 %v953, %v925
    %v956 = vmul.f32 %v954, %v926
    %v957 = vmul.f32 %v955, 1.442695
    %v958 = vpow.pop %v957
    %v959 = vmul.f32 %v956, 1.442695
    %v960 = vpow.pop %v959
    %v961 = vmul.f32 %v951, %v958
    %v962 = vmul.f32 %v952, %v960
    %v963 = vsub.f32 1.0, %v961
    %v964 = vsub.f32 1.0, %v962
    %v965 = vmul.f32 %v923, %v963
    %v966 = vmul.f32 %v924, %v964
    %v967 = vadd.f32 %v965, 1.0
    %v968 = vadd.f32 %v966, 1.0
    %v969 = vmul.f32 %v917, %v967
    %v970 = vmul.f32 %v918, %v968
    %s971 = scalar_lea.vmem [#allocation3], 16
    %972 = vst [vmem:[%s971] sm:$0xff] %v969
    %973 = vst [vmem:[%s971 + $0x8] sm:$0xff] %v970
    // Predicated region
    $region34: #{tpu_custom_call.1} parent=1 // pred_check
      _
    $region35: #{tpu_custom_call.1} parent=1 // pred_check_branch
      %975 = sbr.rel (0) target = $region37
    $region36: #{tpu_custom_call.1} parent=1 // pred_region
      %s977 = ssub.s32 512, 512
      %978 = vsyncadd [#allocation4], %s977
      %s979 = sshll.u32 [#allocation3], 4
      %s980 = int_to_ptr.vmem [resolvable:$true] %s979
      %985 = dma.vmem_to_hbm [thread:$0]  %s980, 512, %s8, [#allocation4], 256, 256, 16
    $region37: #{tpu_custom_call.1} parent=1 // pred_fallthru
      _
    // Predicated region
    $region38: #{tpu_custom_call.1} parent=1 // pred_check
      _
    $region39: #{tpu_custom_call.1} parent=1 // pred_check_branch
      %987 = sbr.rel (0) target = $region41
    $region40: #{tpu_custom_call.1} parent=1 // pred_region
      %988 = dma.done [#allocation4], 512
    $region41: #{tpu_custom_call.1} parent=1 // pred_fallthru
      _
    %989 = vsyncpa [#allocation4], 1

</llo_original>
